<compile_context>
chip_gen: v7x
topology: tpu7x:2x2x1
jax: 0.10.0
libtpu: 0.0.40
codegen_flags: <defaults>
</compile_context>

<pallas_src>
import functools

import numpy as np
import jax
import jax.numpy as jnp
from jax.experimental import pallas as pl
from jax.experimental.pallas import tpu as pltpu


def _bert_base_kernel(left_ref, right_ref, slen_ref,      # scalar prefetch (SMEM), [B] each
                      emb_ref,                             # VMEM input   (tb, S_raw, D)
                      ctx_ref, asp_ref,                    # VMEM outputs (tb, msl,  D)
                      scr_ref,                             # VMEM scratch (S_raw + msl, D)
                      *, msl, tb, s_raw):
    g = pl.program_id(0)
    base = g * tb
    d = emb_ref.shape[2]

    # Hoisted constants reused by every sample in the tile.
    rows = jax.lax.broadcasted_iota(jnp.int32, (msl, 1), 0)
    zeros = jnp.zeros((msl, d), emb_ref.dtype)

    # One-time: zero the scratch slack rows [S_raw, S_raw + msl).  They are only
    # ever read at masked positions; zeroing keeps even malformed spans
    # deterministic.  Scratch persists across grid steps.
    @pl.when(g == 0)
    def _init():
        scr_ref[pl.ds(s_raw, msl), :] = zeros

    # tb is a small compile-time constant -> static unrolled loop; each sample
    # is a couple of slices + VPU selects (pure load/select, no MXU work).
    for t in range(tb):
        left = left_ref[base + t]
        right = right_ref[base + t]
        slen = slen_ref[base + t]

        # Bounce this sample's rows through the VMEM scratch so the
        # data-dependent asp window [left, left + msl) is always an in-bounds
        # ref slice (the slack tail is zero and masked anyway).
        scr_ref[pl.ds(0, s_raw), :] = emb_ref[t]

        # ctx[j] = emb[j + 1] for j < slen - 2 (strip [CLS]/[SEP]); zero-pad to msl.
        if s_raw >= msl + 1:
            ctx_rows = emb_ref[t, pl.ds(1, msl), :]     # direct (common case)
        else:
            ctx_rows = scr_ref[pl.ds(1, msl), :]        # degenerate short-S case
        ctx_ref[t] = jnp.where(rows < slen - 2, ctx_rows, zeros)

        # asp[j] = emb[left + j] for j < right - left; zero-pad to msl.
        start = jnp.minimum(jnp.maximum(left, 0), s_raw)   # clamp: slice stays in-bounds
        asp_rows = scr_ref[pl.ds(start, msl), :]
        asp_ref[t] = jnp.where(rows < right - left, asp_rows, zeros)


def _choose_block_b(batch, per_sample_bytes, budget_bytes, max_tb):
    """Largest divisor of `batch` that fits the VMEM budget; prefer grid >= 2."""
    cap = budget_bytes // max(per_sample_bytes, 1)
    cap = int(max(1, min(max_tb, cap)))
    divisors = [d for d in range(1, batch + 1) if batch % d == 0 and d <= cap]
    if not divisors:
        return 1
    # Prefer >= 2 grid steps so ("parallel",) can shard batch across v7x's 2 TCs.
    multi = [d for d in divisors if batch // d >= 2]
    return max(multi) if multi else max(divisors)


def bert_base_forward(emb, mask, left, right, slen, max_seq_len, *, block_b=None):
    """emb: [B, S_raw, D], mask: [B, L] int, left/right/slen: [B] int.

    Returns (ctx [B, MSL, D], asp [B, MSL, D], ctx_len [B] i32, asp_len [B] i32),
    in emb's dtype (no forced upcast).
    """
    B, S_raw, D = emb.shape
    msl = int(max_seq_len)
    dtype = emb.dtype
    elem = jnp.dtype(dtype).itemsize

    # ---- trivial scalar outputs: plain JAX (no kernel DMA / SMEM outputs) ----
    ctx_len = jnp.sum((mask != 0).astype(jnp.int32), axis=1)
    asp_len = right.astype(jnp.int32) - left.astype(jnp.int32)

    # ---- generation-aware block / VMEM sizing ----
    try:
        vmem_cap = int(pltpu.get_tpu_info().vmem_capacity_bytes)
    except Exception:
        vmem_cap = 64 << 20                       # conservative (v7x per-TC)
    budget = min(vmem_cap // 2, 72 << 20)         # 128 MiB parts -> 64-72 MiB, v7x -> 32 MiB

    scratch_bytes = elem * D * (S_raw + msl)
    # per sample: double-buffered input block + two double-buffered output blocks
    per_sample = elem * D * (2 * S_raw + 4 * msl)
    max_tb = 16 if block_b is None else max(1, int(block_b))
    tb = _choose_block_b(B, per_sample, max(budget - scratch_bytes, per_sample), max_tb)

    footprint = per_sample * tb + scratch_bytes
    vmem_limit = int(max(footprint + (2 << 20), 16 << 20))          # >= v5e default
    vmem_limit = int(min(vmem_limit, max(vmem_cap - (8 << 20), 16 << 20)))  # <= physical

    kernel = functools.partial(_bert_base_kernel, msl=msl, tb=tb, s_raw=S_raw)

    grid_spec = pltpu.PrefetchScalarGridSpec(
        num_scalar_prefetch=3,
        grid=(B // tb,),
        # Blocks cover the full S and D dims -> no (8,128) padding, no emb copy.
        in_specs=[pl.BlockSpec((tb, S_raw, D), lambda g, l, r, s: (g, 0, 0))],
        out_specs=[
            pl.BlockSpec((tb, msl, D), lambda g, l, r, s: (g, 0, 0)),
            pl.BlockSpec((tb, msl, D), lambda g, l, r, s: (g, 0, 0)),
        ],
        scratch_shapes=[pltpu.VMEM((S_raw + msl, D), dtype)],
    )

    ctx, asp = pl.pallas_call(
        kernel,
        grid_spec=grid_spec,
        out_shape=(
            jax.ShapeDtypeStruct((B, msl, D), dtype),
            jax.ShapeDtypeStruct((B, msl, D), dtype),
        ),
        compiler_params=pltpu.CompilerParams(
            dimension_semantics=("parallel",),    # batch axis: shards across TCs on v7x
            vmem_limit_bytes=vmem_limit,
        ),
    )(left.astype(jnp.int32), right.astype(jnp.int32), slen.astype(jnp.int32), emb)

    return ctx, asp, ctx_len, asp_len


def _reference(emb, mask, left, right, slen, msl):
    # Pure-JAX reference of the same semantics (validation only).
    B, S_raw, D = emb.shape
    j = jnp.arange(msl)
    ctx = jnp.where(j[None, :, None] < (slen[:, None, None] - 2),
                    emb[:, 1:1 + msl, :], 0.0)
    idx = jnp.clip(left[:, None] + j[None, :], 0, S_raw - 1)
    asp = jnp.take_along_axis(emb, jnp.broadcast_to(idx[:, :, None], (B, msl, D)),
                              axis=1)
    asp = jnp.where(j[None, :, None] < (right - left)[:, None, None], asp, 0.0)
    ctx_len = jnp.sum((mask != 0).astype(jnp.int32), axis=1)
    asp_len = right - left
    return ctx, asp, ctx_len, asp_len


if __name__ == "__main__":
    # Small shapes consistent with the module's forward.
    B = 2            # batch
    MSL = 8          # opt.max_seq_len
    D = 32           # opt.embed_dim
    S_RAW = MSL + 2  # raw BERT length incl [CLS]/[SEP]
    VOCAB = 64

    key = jax.random.PRNGKey(0)
    k_emb, k_ids = jax.random.split(key)

    # TODO(synk): opt.bse.get_vector is an external pretrained BERT encoder; it is
    # emulated here by a deterministic embedding-table lookup (glue, not the kernel).
    embed_table = jax.random.normal(k_emb, (VOCAB, D), dtype=jnp.float32)
    text_raw_indices = jax.random.randint(k_ids, (B, S_RAW), 1, VOCAB, dtype=jnp.int32)

    # Per-sample raw BERT lengths (incl [CLS]/[SEP]) and aspect spans "left_right".
    slen_np = np.array([S_RAW, 7], dtype=np.int32)
    aspect_position_text = ["3_5", "2_4"]

    # text_raw_indices_mask: nonzero over the real (non-special) tokens.
    mask_np = np.zeros((B, MSL), dtype=np.int32)
    for b in range(B):
        mask_np[b, : slen_np[b] - 2] = 1

    left_np = np.array([int(s.split("_")[0]) for s in aspect_position_text],
                       dtype=np.int32)
    right_np = np.array([int(s.split("_")[1]) for s in aspect_position_text],
                        dtype=np.int32)

    emb = embed_table[text_raw_indices]              # [B, S_RAW, D] f32 (glue lookup)
    mask = jnp.asarray(mask_np)
    left = jnp.asarray(left_np)
    right = jnp.asarray(right_np)
    slen = jnp.asarray(slen_np)

    ctx, asp, ctx_len, asp_len = bert_base_forward(emb, mask, left, right, slen, MSL)
    jax.block_until_ready((ctx, asp, ctx_len, asp_len))

    # Validate against a pure-JAX reference.
    r_ctx, r_asp, r_ctx_len, r_asp_len = _reference(emb, mask, left, right, slen, MSL)
    np.testing.assert_allclose(np.asarray(ctx), np.asarray(r_ctx), atol=1e-5, rtol=1e-5)
    np.testing.assert_allclose(np.asarray(asp), np.asarray(r_asp), atol=1e-5, rtol=1e-5)
    np.testing.assert_array_equal(np.asarray(ctx_len), np.asarray(r_ctx_len))
    np.testing.assert_array_equal(np.asarray(asp_len), np.asarray(r_asp_len))

    print("KERNEL_OK")
</pallas_src>

<mosaic_0001>
module attributes {stable_mosaic.version = 11 : i64} {
  func.func @_bert_base_kernel(%arg0: i32, %arg1: memref<2xi32, #tpu.memory_space<smem>>, %arg2: memref<2xi32, #tpu.memory_space<smem>>, %arg3: memref<2xi32, #tpu.memory_space<smem>>, %arg4: memref<1x10x32xf32, #tpu.memory_space<vmem>>, %arg5: memref<1x8x32xf32, #tpu.memory_space<vmem>>, %arg6: memref<1x8x32xf32, #tpu.memory_space<vmem>>, %arg7: memref<18x32xf32, #tpu.memory_space<vmem>>) attributes {dimension_semantics = [#tpu.dimension_semantics<parallel>], iteration_bounds = array<i64: 2>, scalar_prefetch = 3 : i64, scratch_operands = 1 : i64, tpu.core_type = #tpu.core_type<tc>, window_params = [{transform_indices = @transform_0, window_bounds = array<i64: 1, 10, 32>}, {transform_indices = @transform_1, window_bounds = array<i64: 1, 8, 32>}, {transform_indices = @transform_2, window_bounds = array<i64: 1, 8, 32>}]} {
    %c1_i32 = arith.constant 1 : i32
    %0 = arith.muli %arg0, %c1_i32 : i32
    %1 = tpu.iota {dimensions = array<i32: 0>} : vector<8x1xi32>
    %cst = arith.constant 0.000000e+00 : f32
    %2 = vector.broadcast %cst : f32 to vector<8x32xf32>
    %c0_i32 = arith.constant 0 : i32
    %3 = arith.cmpi eq, %arg0, %c0_i32 : i32
    %4 = arith.extui %3 : i1 to i32
    %c0_i32_0 = arith.constant 0 : i32
    %5 = arith.cmpi ne, %4, %c0_i32_0 : i32
    scf.if %5 {
      %c10 = arith.constant 10 : index
      %c0_18 = arith.constant 0 : index
      %42 = vector.load %arg7[%c10, %c0_18] : memref<18x32xf32, #tpu.memory_space<vmem>>, vector<8x32xf32>
      tpu.vector_store %arg7[%c10, %c0_18], %2 {strides = array<i32>} : memref<18x32xf32, #tpu.memory_space<vmem>>, vector<8x32xf32>,
    } else {
    }
    %c0_i32_1 = arith.constant 0 : i32
    %6 = arith.addi %0, %c0_i32_1 : i32
    %7 = arith.index_cast %6 : i32 to index
    %8 = memref.load %arg1[%7] : memref<2xi32, #tpu.memory_space<smem>>
    %c0_i32_2 = arith.constant 0 : i32
    %9 = arith.addi %0, %c0_i32_2 : i32
    %10 = arith.index_cast %9 : i32 to index
    %11 = memref.load %arg2[%10] : memref<2xi32, #tpu.memory_space<smem>>
    %c0_i32_3 = arith.constant 0 : i32
    %12 = arith.addi %0, %c0_i32_3 : i32
    %13 = arith.index_cast %12 : i32 to index
    %14 = memref.load %arg3[%13] : memref<2xi32, #tpu.memory_space<smem>>
    %c0 = arith.constant 0 : index
    %c0_4 = arith.constant 0 : index
    %c0_5 = arith.constant 0 : index
    %15 = vector.load %arg4[%c0, %c0_4, %c0_5] : memref<1x10x32xf32, #tpu.memory_space<vmem>>, vector<1x10x32xf32>
    %16 = vector.shape_cast %15 : vector<1x10x32xf32> to vector<10x32xf32>
    %c0_6 = arith.constant 0 : index
    %c0_7 = arith.constant 0 : index
    %17 = vector.load %arg7[%c0_6, %c0_7] : memref<18x32xf32, #tpu.memory_space<vmem>>, vector<10x32xf32>
    tpu.vector_store %arg7[%c0_6, %c0_7], %16 {strides = array<i32>} : memref<18x32xf32, #tpu.memory_space<vmem>>, vector<10x32xf32>,
    %c0_8 = arith.constant 0 : index
    %c1 = arith.constant 1 : index
    %c0_9 = arith.constant 0 : index
    %18 = vector.load %arg4[%c0_8, %c1, %c0_9] : memref<1x10x32xf32, #tpu.memory_space<vmem>>, vector<1x8x32xf32>
    %19 = vector.shape_cast %18 : vector<1x8x32xf32> to vector<8x32xf32>
    %c2_i32 = arith.constant 2 : i32
    %20 = arith.subi %14, %c2_i32 : i32
    %21 = vector.broadcast %20 : i32 to vector<8x1xi32>
    %22 = arith.cmpi slt, %1, %21 : vector<8x1xi32>
    %23 = vector.shape_cast %22 : vector<8x1xi1> to vector<8x1xi1>
    %24 = vector.broadcast %23 : vector<8x1xi1> to vector<8x32xi1>
    %25 = arith.select %24, %19, %2 : vector<8x32xi1>, vector<8x32xf32>
    %c0_10 = arith.constant 0 : index
    %c0_11 = arith.constant 0 : index
    %c0_12 = arith.constant 0 : index
    %26 = vector.load %arg5[%c0_10, %c0_11, %c0_12] : memref<1x8x32xf32, #tpu.memory_space<vmem>>, vector<1x8x32xf32>
    %27 = vector.shape_cast %26 : vector<1x8x32xf32> to vector<8x32xf32>
    %28 = vector.shape_cast %25 : vector<8x32xf32> to vector<1x8x32xf32>
    tpu.vector_store %arg5[%c0_10, %c0_11, %c0_12], %28 {strides = array<i32>} : memref<1x8x32xf32, #tpu.memory_space<vmem>>, vector<1x8x32xf32>,
    %c0_i32_13 = arith.constant 0 : i32
    %29 = arith.maxsi %8, %c0_i32_13 : i32
    %c10_i32 = arith.constant 10 : i32
    %30 = arith.minsi %29, %c10_i32 : i32
    %31 = arith.index_cast %30 : i32 to index
    %c0_14 = arith.constant 0 : index
    %32 = vector.load %arg7[%31, %c0_14] : memref<18x32xf32, #tpu.memory_space<vmem>>, vector<8x32xf32>
    %33 = arith.subi %11, %8 : i32
    %34 = vector.broadcast %33 : i32 to vector<8x1xi32>
    %35 = arith.cmpi slt, %1, %34 : vector<8x1xi32>
    %36 = vector.shape_cast %35 : vector<8x1xi1> to vector<8x1xi1>
    %37 = vector.broadcast %36 : vector<8x1xi1> to vector<8x32xi1>
    %38 = arith.select %37, %32, %2 : vector<8x32xi1>, vector<8x32xf32>
    %c0_15 = arith.constant 0 : index
    %c0_16 = arith.constant 0 : index
    %c0_17 = arith.constant 0 : index
    %39 = vector.load %arg6[%c0_15, %c0_16, %c0_17] : memref<1x8x32xf32, #tpu.memory_space<vmem>>, vector<1x8x32xf32>
    %40 = vector.shape_cast %39 : vector<1x8x32xf32> to vector<8x32xf32>
    %41 = vector.shape_cast %38 : vector<8x32xf32> to vector<1x8x32xf32>
    tpu.vector_store %arg6[%c0_15, %c0_16, %c0_17], %41 {strides = array<i32>} : memref<1x8x32xf32, #tpu.memory_space<vmem>>, vector<1x8x32xf32>,
    return
  }
  func.func @transform_0(%arg0: i32, %arg1: memref<2xi32, #tpu.memory_space<smem>>, %arg2: memref<2xi32, #tpu.memory_space<smem>>, %arg3: memref<2xi32, #tpu.memory_space<smem>>) -> (i32, i32, i32) {
    %c0_i32 = arith.constant 0 : i32
    %c0_i32_0 = arith.constant 0 : i32
    %c0_i32_1 = arith.constant 0 : i32
    return %arg0, %c0_i32, %c0_i32_0 : i32, i32, i32
  }
  func.func @transform_1(%arg0: i32, %arg1: memref<2xi32, #tpu.memory_space<smem>>, %arg2: memref<2xi32, #tpu.memory_space<smem>>, %arg3: memref<2xi32, #tpu.memory_space<smem>>) -> (i32, i32, i32) {
    %c0_i32 = arith.constant 0 : i32
    %c0_i32_0 = arith.constant 0 : i32
    %c0_i32_1 = arith.constant 0 : i32
    return %arg0, %c0_i32, %c0_i32_0 : i32, i32, i32
  }
  func.func @transform_2(%arg0: i32, %arg1: memref<2xi32, #tpu.memory_space<smem>>, %arg2: memref<2xi32, #tpu.memory_space<smem>>, %arg3: memref<2xi32, #tpu.memory_space<smem>>) -> (i32, i32, i32) {
    %c0_i32 = arith.constant 0 : i32
    %c0_i32_0 = arith.constant 0 : i32
    %c0_i32_1 = arith.constant 0 : i32
    return %arg0, %c0_i32, %c0_i32_0 : i32, i32, i32
  }
}

</mosaic_0001>

<llo_original>
// kernel: tpu_custom_call.1
$region0: #{tpu_custom_call.1}
  #allocation0 [shape = 'u32[]', space=smem, size = 0x4, offset = 0x4, fixed_abs, tag = 'smem constant byte address 0x4 - core index']
  #allocation1 [shape = 'u32[144,128]{1,0:T(1,128)}', space=vmem, size = 0x12000, scoped, tag = 'internal scratch']
  #allocation2 [shape = 'f32[18,32]{1,0:T(8,128)}', space=vmem, size = 0x3000, scoped, tag = 'scratch operand']
  #allocation3 [shape = 's32[1]{0}', space=sflag, size = 0x4, scoped, tag = 'scoped memory for tpu_custom_call.1']
  #allocation4 [shape = 'u8[512]{0}', space=smem, size = 0x200, scoped, tag = 'prefetched SMEM operand 0']
  #allocation5 [shape = 'u8[512]{0}', space=smem, size = 0x200, scoped, tag = 'prefetched SMEM operand 1']
  #allocation6 [shape = 'u8[512]{0}', space=smem, size = 0x200, scoped, tag = 'prefetched SMEM operand 2']
  %s0 = inlined_call_operand.vmem [shape: s32[2], index: 0, kind: input, shape index: {}]
  %s1 = inlined_call_operand.vmem [shape: s32[2], index: 1, kind: input, shape index: {}]
  %s2 = inlined_call_operand.vmem [shape: s32[2], index: 2, kind: input, shape index: {}]
  %s3 = inlined_call_operand.vmem [shape: f32[2,10,32], index: 3, kind: input, shape index: {}]
  %s4 = inlined_call_operand.hbm [shape: f32[2,8,32], index: 4, kind: output, shape index: {0}]
  %s5 = inlined_call_operand.hbm [shape: f32[2,8,32], index: 5, kind: output, shape index: {1}]
  %6 = xla_tuple %s4, %s5
  %s7 = sld [smem:[#allocation0]]
  $region49: #{tpu_custom_call.1} parent=0
    _
  %s9 = ssub.s32 1, %s7
  %s10 = scalar_select 0, %s9, %s7
  %s11 = sshll.u32 %s0, 4
  %s12 = int_to_ptr.vmem [resolvable:$true] %s11
  %14 = dma.vmem_to_smem %s12, 16, [#allocation4], [#allocation3]
  %s15 = sshll.u32 %s1, 4
  %s16 = int_to_ptr.vmem [resolvable:$true] %s15
  %18 = dma.vmem_to_smem %s16, 16, [#allocation5], [#allocation3]
  %s19 = sshll.u32 %s2, 4
  %s20 = int_to_ptr.vmem [resolvable:$true] %s19
  %22 = dma.vmem_to_smem %s20, 16, [#allocation6], [#allocation3]
  %23 = dma.done [#allocation3], 48
  %24 = sfence
  $region1: #{tpu_custom_call.1} parent=0
    #allocation7 [shape = 'u8[8192]{0}', space=vmem, size = 0x2000, scoped, tag = 'output window, operand 0']
    #allocation8 [shape = 's32[2]{0}', space=sflag, size = 0x8, scoped, tag = 'scoped memory for tpu_custom_call.1']
    #allocation9 [shape = 'u8[8192]{0}', space=vmem, size = 0x2000, scoped, tag = 'output window, operand 1']
    #allocation10 [shape = 's32[2]{0}', space=sflag, size = 0x8, scoped, tag = 'scoped memory for tpu_custom_call.1']
    %25 = vsyncpa [#allocation8], 0
    %s26 = scalar_lea.sflag [#allocation8], 1
    %27 = vsyncpa %s26, 0
    %28 = vsyncpa [#allocation10], 0
    %s29 = scalar_lea.sflag [#allocation10], 1
    %30 = vsyncpa %s29, 0
    loop: start=0, step=1, limit=4
    $region2: #{tpu_custom_call.1} parent=1 // loop_pre_header
      _
    $region3: #{tpu_custom_call.1} parent=1 // loop_header
      %s32 = sphi 0, %s36
      %p33 = scmp.ge.s32.totalorder %s32, 4
      %s42 = sphi 0, %s44
      %s45 = sphi 0, %s42
      %s46 = sphi 0, %s45
      %s62 = sphi 0, %s46
      %s68 = sphi 0, %s70
      %s71 = sphi 0, %s68
      %s72 = sphi 0, %s71
      %s88 = sphi 0, %s72
      %s94 = sphi 0, %s96
      %s97 = sphi 0, %s94
      %s98 = sphi 0, %s97
      %s114 = sphi 0, %s98
    $region4: #{tpu_custom_call.1} parent=1 // loop_header_branch
      %35 = sbr.rel (%p33) target = $region8
    $region5: #{tpu_custom_call.1} parent=1 // loop_body
      %s37 = ssub.s32 %s32, 1
      %s38 = ssub.s32 %s32, 2
      %s39 = sadd.s32 %s32, 1
      %s40 = ssub.s32 %s32, %s39
      %p41 = scmp.eq.s32.totalorder %s40, 0
      %s43 = sadd.s32 %s42, 1
      %s44 = scalar_select %p41, %s42, %s43
      %p47 = pneg %p41
      %p48 = scmp.eq.s32.totalorder %s32, 1
      %p49 = por %p47, %p48
      %p50 = scmp.ne.s32.totalorder %s42, %s45
      %p51 = scmp.eq.s32.totalorder %s32, 0
      %p52 = por %p50, %p51
      %p53 = scmp.ne.s32.totalorder %s42, %s45
      %p54 = scmp.eq.s32.totalorder %s37, 1
      %p55 = por %p53, %p54
      %p56 = scmp.ne.s32.totalorder %s45, %s46
      %p57 = scmp.eq.s32.totalorder %s37, 0
      %p58 = por %p56, %p57
      %p59 = scmp.ne.s32.totalorder %s45, %s46
      %p60 = scmp.eq.s32.totalorder %s38, 1
      %p61 = por %p59, %p60
      %p63 = scmp.ne.s32.totalorder %s46, %s62
      %p64 = scmp.eq.s32.totalorder %s38, 0
      %p65 = por %p63, %p64
      %s66 = ssub.s32 %s32, %s39
      %p67 = scmp.eq.s32.totalorder %s66, 0
      %s69 = sadd.s32 %s68, 1
      %s70 = scalar_select %p67, %s68, %s69
      %p73 = pneg %p67
      %p74 = scmp.eq.s32.totalorder %s32, 1
      %p75 = por %p73, %p74
      %p76 = scmp.ne.s32.totalorder %s68, %s71
      %p77 = scmp.eq.s32.totalorder %s32, 0
      %p78 = por %p76, %p77
      %p79 = scmp.ne.s32.totalorder %s68, %s71
      %p80 = scmp.eq.s32.totalorder %s37, 1
      %p81 = por %p79, %p80
      %p82 = scmp.ne.s32.totalorder %s71, %s72
      %p83 = scmp.eq.s32.totalorder %s37, 0
      %p84 = por %p82, %p83
      %p85 = scmp.ne.s32.totalorder %s71, %s72
      %p86 = scmp.eq.s32.totalorder %s38, 1
      %p87 = por %p85, %p86
      %p89 = scmp.ne.s32.totalorder %s72, %s88
      %p90 = scmp.eq.s32.totalorder %s38, 0
      %p91 = por %p89, %p90
      %s92 = ssub.s32 %s32, %s39
      %p93 = scmp.eq.s32.totalorder %s92, 0
      %s95 = sadd.s32 %s94, 1
      %s96 = scalar_select %p93, %s94, %s95
      %p99 = pneg %p93
      %p100 = scmp.eq.s32.totalorder %s32, 1
      %p101 = por %p99, %p100
      %p102 = scmp.ne.s32.totalorder %s94, %s97
      %p103 = scmp.eq.s32.totalorder %s32, 0
      %p104 = por %p102, %p103
      %p105 = scmp.ne.s32.totalorder %s94, %s97
      %p106 = scmp.eq.s32.totalorder %s37, 1
      %p107 = por %p105, %p106
      %p108 = scmp.ne.s32.totalorder %s97, %s98
      %p109 = scmp.eq.s32.totalorder %s37, 0
      %p110 = por %p108, %p109
      %p111 = scmp.ne.s32.totalorder %s97, %s98
      %p112 = scmp.eq.s32.totalorder %s38, 1
      %p113 = por %p111, %p112
      %p115 = scmp.ne.s32.totalorder %s98, %s114
      %p116 = scmp.eq.s32.totalorder %s38, 0
      %p117 = por %p115, %p116
      %p118 = scmp.le.s32.totalorder 1, %s32
      %p119 = scmp.lt.s32.totalorder %s32, 3
      %p120 = pnand %p118, %p119
      %p121 = pneg %p120
      // Predicated region
      $region9: #{tpu_custom_call.1} parent=5 // pred_check
        _
      $region10: #{tpu_custom_call.1} parent=5 // pred_check_branch
        %123 = sbr.rel (%p120) target = $region12
      $region11: #{tpu_custom_call.1} parent=5 // pred_region
        %s124 = ssub.s32 %s32, 1
      $region12: #{tpu_custom_call.1} parent=5 // pred_fallthru
        _
      %p125 = scmp.lt.s32.totalorder %s32, 2
      // Predicated region
      $region13: #{tpu_custom_call.1} parent=5 // pred_check
        %p126 = pneg %p125
      $region14: #{tpu_custom_call.1} parent=5 // pred_check_branch
        %128 = sbr.rel (%p126) target = $region16
      $region15: #{tpu_custom_call.1} parent=5 // pred_region
        // Predicated region
        $region17: #{tpu_custom_call.1} parent=15 // pred_check
          %p129 = pneg %p52
        $region18: #{tpu_custom_call.1} parent=15 // pred_check_branch
          %131 = sbr.rel (%p129) target = $region20
        $region19: #{tpu_custom_call.1} parent=15 // pred_region
          %p132 = scmp.lt.s32.totalorder %s32, 1
          %s133 = scalar_select %p132, %s32, 1
          %s134 = smul.addr %s133, 2
          %s135 = smul.addr %s134, 8
          %s136 = scalar_lea.vmem %s3, %s135
        $region20: #{tpu_custom_call.1} parent=15 // pred_fallthru
          _
      $region16: #{tpu_custom_call.1} parent=5 // pred_fallthru
        _
      %p137 = scmp.le.s32.totalorder 1, %s32
      %p138 = scmp.lt.s32.totalorder %s32, 3
      %p139 = pnand %p137, %p138
      %p140 = pneg %p139
      // Predicated region
      $region21: #{tpu_custom_call.1} parent=5 // pred_check
        _
      $region22: #{tpu_custom_call.1} parent=5 // pred_check_branch
        %142 = sbr.rel (%p139) target = $region24
      $region23: #{tpu_custom_call.1} parent=5 // pred_region
        %s143 = ssub.s32 %s32, 1
        %p144 = scmp.lt.s32.totalorder %s37, 1
        %s145 = scalar_select %p144, %s37, 1
        %s146 = smul.addr %s145, 2
        %s147 = smul.addr %s146, 8
        %s148 = scalar_lea.vmem %s3, %s147
        %p149 = pneg %p58
        %p150 = pneg %p55
        %p151 = pneg %p84
        %p152 = pneg %p81
        %s153 = sand.u32 %s71, 1
        %s154 = scalar_lea.sflag [#allocation8], %s153
        %s155 = sand.u32 %s71, 1
        %s156 = smul.addr %s155, 8
        %s157 = scalar_lea.vmem [#allocation7], %s156
        %p158 = pneg %p110
        %p159 = pneg %p107
        %s160 = sand.u32 %s97, 1
        %s161 = scalar_lea.sflag [#allocation10], %s160
        %s162 = sand.u32 %s97, 1
        %s163 = smul.addr %s162, 8
        %s164 = scalar_lea.vmem [#allocation9], %s163
        %p165 = scmp.lt.s32.totalorder %s37, 1
        %s166 = scalar_select %p165, %s37, 1
        %s167 = smul.addr %s166, 2
        %s168 = smul.addr %s167, 8
        %s169 = scalar_lea.vmem %s3, %s168
        %v170 = vlaneseq
        %v171 = vshrl.u32 %v170, 7
        %p172 = scmp.eq.s32.totalorder %s37, 0
        // Predicated region
        $region25: #{tpu_custom_call.1} parent=23 // pred_check
          %p173 = pneg %p172
        $region26: #{tpu_custom_call.1} parent=23 // pred_check_branch
          %175 = sbr.rel (%p173) target = $region28
        $region27: #{tpu_custom_call.1} parent=23 // pred_region
          %vm176 = vcmask 261120
          %177 = vst.msk [vmem:[#allocation2 + $0xa] sm:$0xff] %vm176, 0.0
        $region28: #{tpu_custom_call.1} parent=23 // pred_fallthru
          _
        %s178 = sld [smem:[#allocation4 + %s37]]
        %s179 = sld [smem:[#allocation5 + %s37]]
        %s180 = sld [smem:[#allocation6 + %s37]]
        %v181 = vld [vmem:[%s169] sm:$0xff]
        %v182 = vld [vmem:[%s169 + $0x8] sm:$0x3]
        %vm183 = vcmask 261120
        %184 = vst.msk [vmem:[#allocation2] sm:$0xff] %vm183, %v181
        %vm185 = vcmask 254976
        %186 = vst.msk [vmem:[#allocation2 + $0x8] sm:$0x3] %vm185, %v182
        %v187 = vld [vmem:[%s169 + $0x1] sm:$0xff]
        %s188 = ssub.s32 %s180, 2
        %v189 = vstv %s188
        %vm190 = vcmp.lt.s32.totalorder %v171, %v189
        %v191 = vsel %vm190, 1, 0
        %vm192 = vcmp.eq.s32.totalorder %v191, 1
        %v193 = vsel %vm192, %v187, 0.0
        %194 = vst.msk [vmem:[%s157] sm:$0xff] %vm183, %v193
        %p195 = scmp.gt.s32.totalorder %s178, 0
        %s196 = scalar_select %p195, %s178, 0
        %p197 = scmp.lt.s32.totalorder %s196, 10
        %s198 = scalar_select %p197, %s196, 10
        %s199 = scalar_lea.vmem [#allocation2], %s198
        %v200 = vld [vmem:[%s199] sm:$0xff]
        %s201 = ssub.s32 %s179, %s178
        %v202 = vstv %s201
        %vm203 = vcmp.lt.s32.totalorder %v171, %v202
        %v204 = vsel %vm203, 1, 0
        %vm205 = vcmp.eq.s32.totalorder %v204, 1
        %v206 = vsel %vm205, %v200, 0.0
        %207 = vst.msk [vmem:[%s164] sm:$0xff] %vm183, %v206
        %s208 = sand.u32 %s71, 1
        %s209 = scalar_lea.sflag [#allocation8], %s208
        %s210 = sand.u32 %s71, 1
        %s211 = smul.addr %s210, 8
        %s212 = scalar_lea.vmem [#allocation7], %s211
        %s213 = sand.u32 %s97, 1
        %s214 = scalar_lea.sflag [#allocation10], %s213
        %s215 = sand.u32 %s97, 1
        %s216 = smul.addr %s215, 8
        %s217 = scalar_lea.vmem [#allocation9], %s216
        // Predicated region
        $region29: #{tpu_custom_call.1} parent=23 // pred_check
          %p218 = pneg %p81
        $region30: #{tpu_custom_call.1} parent=23 // pred_check_branch
          %220 = sbr.rel (%p218) target = $region32
        $region31: #{tpu_custom_call.1} parent=23 // pred_region
          %s222 = ssub.s32 128, 128
          %223 = vsyncadd %s209, %s222
          %s224 = smul.addr %s37, 128
          %s225 = scalar_lea.hbm %s4, %s224
          %s227 = sshll.u32 %s212, 4
          %s228 = int_to_ptr.vmem [resolvable:$true] %s227
          %230 = dma.vmem_to_hbm [thread:$0]  %s228, 128, %s225, %s209
        $region32: #{tpu_custom_call.1} parent=23 // pred_fallthru
          _
        // Predicated region
        $region33: #{tpu_custom_call.1} parent=23 // pred_check
          %p231 = pneg %p107
        $region34: #{tpu_custom_call.1} parent=23 // pred_check_branch
          %233 = sbr.rel (%p231) target = $region36
        $region35: #{tpu_custom_call.1} parent=23 // pred_region
          %s235 = ssub.s32 128, 128
          %236 = vsyncadd %s214, %s235
          %s237 = smul.addr %s37, 128
          %s238 = scalar_lea.hbm %s5, %s237
          %s240 = sshll.u32 %s217, 4
          %s241 = int_to_ptr.vmem [resolvable:$true] %s240
          %243 = dma.vmem_to_hbm [thread:$0]  %s241, 128, %s238, %s214
        $region36: #{tpu_custom_call.1} parent=23 // pred_fallthru
          _
      $region24: #{tpu_custom_call.1} parent=5 // pred_fallthru
        _
      %p244 = scmp.le.s32.totalorder 2, %s32
      // Predicated region
      $region37: #{tpu_custom_call.1} parent=5 // pred_check
        %p245 = pneg %p244
      $region38: #{tpu_custom_call.1} parent=5 // pred_check_branch
        %247 = sbr.rel (%p245) target = $region40
      $region39: #{tpu_custom_call.1} parent=5 // pred_region
        %s248 = ssub.s32 %s32, 2
        // Predicated region
        $region41: #{tpu_custom_call.1} parent=39 // pred_check
          %p249 = pneg %p87
        $region42: #{tpu_custom_call.1} parent=39 // pred_check_branch
          %251 = sbr.rel (%p249) target = $region44
        $region43: #{tpu_custom_call.1} parent=39 // pred_region
          %s252 = sand.u32 %s72, 1
          %s253 = scalar_lea.sflag [#allocation8], %s252
          %s254 = sand.u32 %s72, 1
          %s255 = smul.addr %s254, 8
          %s256 = scalar_lea.vmem [#allocation7], %s255
          %257 = dma.done %s253, 128
        $region44: #{tpu_custom_call.1} parent=39 // pred_fallthru
          _
        // Predicated region
        $region45: #{tpu_custom_call.1} parent=39 // pred_check
          %p258 = pneg %p113
        $region46: #{tpu_custom_call.1} parent=39 // pred_check_branch
          %260 = sbr.rel (%p258) target = $region48
        $region47: #{tpu_custom_call.1} parent=39 // pred_region
          %s261 = sand.u32 %s98, 1
          %s262 = scalar_lea.sflag [#allocation10], %s261
          %s263 = sand.u32 %s98, 1
          %s264 = smul.addr %s263, 8
          %s265 = scalar_lea.vmem [#allocation9], %s264
          %266 = dma.done %s262, 128
        $region48: #{tpu_custom_call.1} parent=39 // pred_fallthru
          _
      $region40: #{tpu_custom_call.1} parent=5 // pred_fallthru
        _
    $region6: #{tpu_custom_call.1} parent=1 // loop_footer
      %s36 = sadd.s32 1, %s32
    $region7: #{tpu_custom_call.1} parent=1 // loop_footer_branch
      %31 = sbr.rel target = $region3
    $region8: #{tpu_custom_call.1} parent=1 // loop_exit
      _
    %267 = vsyncpa [#allocation8], 1
    %s268 = scalar_lea.sflag [#allocation8], 1
    %269 = vsyncpa %s268, 1
    %270 = vsyncpa [#allocation10], 1
    %s271 = scalar_lea.sflag [#allocation10], 1
    %272 = vsyncpa %s271, 1

</llo_original>
